<compile_context>
chip_gen: v6e
topology: v6e:2x2x1
jax: 0.10.0
libtpu: 0.0.40
codegen_flags: <defaults>
</compile_context>

<pallas_src>
import functools

import jax
import jax.numpy as jnp
from jax.experimental import pallas as pl
from jax.experimental.pallas import tpu as pltpu


_EPS = 1e-8  # PyTorch cosine_similarity default eps


def _infonce_kernel(a_ref, p_ref, n_ref, pos_out_ref, exp_out_ref, *,
                    batch, block_rows, tiles_per_shard):
    s = pl.program_id(0)   # shard axis ("parallel")
    t = pl.program_id(1)   # tile-within-shard axis ("arbitrary", reduction)

    # Init the resident per-shard accumulator blocks once per shard.
    @pl.when(t == 0)
    def _init():
        pos_out_ref[...] = jnp.zeros_like(pos_out_ref)
        exp_out_ref[...] = jnp.zeros_like(exp_out_ref)

    a = a_ref[...].astype(jnp.float32)   # (TB, D)
    p = p_ref[...].astype(jnp.float32)
    n = n_ref[...].astype(jnp.float32)

    # Row-wise dot products / squared norms (VPU multiplies + one lane reduction
    # per row; deliberately NOT routed through the MXU -- kernel is HBM-bound).
    aa = jnp.sum(a * a, axis=1, keepdims=True)
    pp = jnp.sum(p * p, axis=1, keepdims=True)
    nn = jnp.sum(n * n, axis=1, keepdims=True)
    ap = jnp.sum(a * p, axis=1, keepdims=True)
    an = jnp.sum(a * n, axis=1, keepdims=True)

    # cos = dot / max(||x1||*||x2||, eps) == dot * rsqrt(max(w1*w2, eps^2))
    pos = ap * jax.lax.rsqrt(jnp.maximum(aa * pp, _EPS * _EPS))   # (TB, 1)
    neg = an * jax.lax.rsqrt(jnp.maximum(aa * nn, _EPS * _EPS))   # (TB, 1)

    # Fixed shift m = 1.0 is safe because cosine similarities are in [-1, 1]:
    # exp(d - 1) never overflows, so no data-dependent max / online rescale.
    e = jnp.exp(pos - 1.0) + jnp.exp(neg - 1.0)                   # (TB, 1)

    # UNclamped tile index: padded/clamped (shard, tile) slots land past `batch`
    # and are fully masked; a ragged last tile is partially masked. Full interior
    # tiles skip the iota/compare/select work entirely.
    tile_idx = s * tiles_per_shard + t
    row0 = tile_idx * block_rows
    needs_mask = row0 + block_rows > batch

    @pl.when(jnp.logical_not(needs_mask))
    def _full_tile():
        pos_out_ref[...] += jnp.sum(pos, axis=0, keepdims=True).reshape(1, 1, 1)
        exp_out_ref[...] += jnp.sum(e, axis=0, keepdims=True).reshape(1, 1, 1)

    @pl.when(needs_mask)
    def _ragged_tile():
        rows = row0 + jax.lax.broadcasted_iota(jnp.int32, pos.shape, 0)
        valid = rows < batch
        pos_out_ref[...] += jnp.sum(jnp.where(valid, pos, 0.0),
                                    axis=0, keepdims=True).reshape(1, 1, 1)
        exp_out_ref[...] += jnp.sum(jnp.where(valid, e, 0.0),
                                    axis=0, keepdims=True).reshape(1, 1, 1)


def _device_kind() -> str:
    try:
        return jax.devices()[0].device_kind.lower()
    except Exception:
        return ""


def _is_multi_tensorcore_chip() -> bool:
    # v7x packs 2 TensorCores per chip (and only 64 MiB VMEM per core);
    # v5e / v6e have a single TensorCore with 128 MiB VMEM.
    return "7" in _device_kind()


def _vmem_capacity_bytes() -> int:
    try:
        cap = int(pltpu.get_tpu_info().vmem_capacity_bytes)
        if cap > 0:
            return cap
    except Exception:
        pass
    # Fallback: 64 MiB per TensorCore on v7x, 128 MiB on v5e/v6e.
    return (64 if _is_multi_tensorcore_chip() else 128) * 1024 * 1024


def infonce_loss(anchor: jax.Array, positive: jax.Array, negative: jax.Array,
                 *, block_rows: int = 4096, num_shards=None) -> jax.Array:
    """Pallas TPU implementation of InfoNCELoss.forward. Returns a scalar f32.

    Callers with bf16 activations should pass them as bf16 (the kernel upcasts to
    f32 internally); the kernel is HBM-bound, so halving the input itemsize is a
    near-2x wall-clock win.
    """
    assert anchor.shape == positive.shape == negative.shape
    assert anchor.ndim == 2, "expected (B, D) inputs"
    B, D = anchor.shape

    # --- per-generation VMEM budgeting -------------------------------------
    vmem_cap = _vmem_capacity_bytes()
    # ~75% of per-core VMEM made visible to Mosaic, ~60% spent on the streaming
    # tiles + in-kernel f32 working set (slack left for compiler scratch / sems).
    vmem_limit = min(vmem_cap * 3 // 4, 100 * 1024 * 1024)
    input_budget = vmem_cap * 3 // 5
    if _is_multi_tensorcore_chip():
        # v7x: only 64 MiB per TensorCore -- hard-cap regardless of query result.
        vmem_limit = min(vmem_limit, 48 * 1024 * 1024)
        input_budget = min(input_budget, 38 * 1024 * 1024)

    itemsize = jnp.dtype(anchor.dtype).itemsize
    pipeline_per_row = 3 * 2 * D * itemsize          # 3 inputs x double-buffered tiles
    f32_live = 4 if itemsize < 4 else 2              # in-kernel f32 upcasts + live temp
    compute_per_row = f32_live * D * 4
    rows_fit = max(8, input_budget // (pipeline_per_row + compute_per_row))

    tb = int(min(block_rows, rows_fit))
    if tb >= B:
        tb = B                        # single block == full batch dim (always legal)
    else:
        tb = max(8, (tb // 8) * 8)    # sublane-aligned tile
    n_tiles = pl.cdiv(B, tb)

    # --- shard (TensorCore) split -------------------------------------------
    if num_shards is None:
        num_shards = 2 if _is_multi_tensorcore_chip() else 1
    shards = max(1, min(int(num_shards), n_tiles))

    # v7x load balance: an odd tile count gives one core a padded (fully masked,
    # but fully DMA'd) slot; prefer a slightly smaller tb with an even tile count.
    if shards == 2 and n_tiles > 1 and n_tiles % 2 == 1:
        for cand in range(tb, max(8, tb // 2) - 1, -8):
            if pl.cdiv(B, cand) % 2 == 0:
                tb = cand
                n_tiles = pl.cdiv(B, cand)
                break

    tiles_per_shard = pl.cdiv(n_tiles, shards)

    def in_map(s, t):
        # Clamp so over-allocated (shard, tile) slots re-read a valid block; the
        # UNclamped row index inside the kernel masks their contribution to zero.
        return (jnp.minimum(s * tiles_per_shard + t, n_tiles - 1), 0)

    out_map = lambda s, t: (s, 0, 0)

    kernel = functools.partial(
        _infonce_kernel, batch=B, block_rows=tb, tiles_per_shard=tiles_per_shard)

    part_pos, part_exp = pl.pallas_call(
        kernel,
        grid=(shards, tiles_per_shard),
        in_specs=[pl.BlockSpec((tb, D), in_map)] * 3,
        out_specs=(pl.BlockSpec((1, 1, 1), out_map),
                   pl.BlockSpec((1, 1, 1), out_map)),
        out_shape=(jax.ShapeDtypeStruct((shards, 1, 1), jnp.float32),
                   jax.ShapeDtypeStruct((shards, 1, 1), jnp.float32)),
        compiler_params=pltpu.CompilerParams(
            dimension_semantics=("parallel", "arbitrary"),
            vmem_limit_bytes=int(vmem_limit)),
    )(anchor, positive, negative)

    # Tiny scalar epilogue: combine per-shard partials.
    sum_pos = jnp.sum(part_pos)
    sum_exp = jnp.sum(part_exp)
    lse = 1.0 + jnp.log(sum_exp)                 # fixed shift m = 1.0
    return jnp.float32(B) * lse - sum_pos


def _infonce_ref(anchor, positive, negative):
    # Pure-JAX reference mirroring the PyTorch module.
    def cos(x1, x2):
        num = jnp.sum(x1 * x2, axis=1)
        den = jnp.maximum(
            jnp.linalg.norm(x1, axis=1) * jnp.linalg.norm(x2, axis=1), _EPS)
        return num / den

    pos = cos(anchor, positive)
    neg = cos(anchor, negative)
    d = jnp.concatenate([pos, neg])
    labels = jnp.concatenate([jnp.ones_like(pos), jnp.zeros_like(neg)])
    log_softmax = d - jax.scipy.special.logsumexp(d)
    return -jnp.sum(labels * log_softmax)


if __name__ == "__main__":
    key = jax.random.PRNGKey(0)
    k1, k2, k3 = jax.random.split(key, 3)

    # 1) Small shapes matching the module's (batch, features) convention.
    B, D = 8, 32
    anchor = jax.random.normal(k1, (B, D), dtype=jnp.float32)
    positive = jax.random.normal(k2, (B, D), dtype=jnp.float32)
    negative = jax.random.normal(k3, (B, D), dtype=jnp.float32)
    loss = jax.block_until_ready(infonce_loss(anchor, positive, negative))
    ref = jax.block_until_ready(_infonce_ref(anchor, positive, negative))
    assert jnp.allclose(loss, ref, rtol=1e-5, atol=1e-5), (loss, ref)

    # 2) Tiled path with a ragged last tile (full-tile fast path + masked tail).
    B2, D2 = 200, 128
    a2 = jax.random.normal(k1, (B2, D2), dtype=jnp.float32)
    p2 = jax.random.normal(k2, (B2, D2), dtype=jnp.float32)
    n2 = jax.random.normal(k3, (B2, D2), dtype=jnp.float32)
    loss2 = jax.block_until_ready(infonce_loss(a2, p2, n2, block_rows=64))
    ref2 = jax.block_until_ready(_infonce_ref(a2, p2, n2))
    assert jnp.allclose(loss2, ref2, rtol=1e-5, atol=1e-5), (loss2, ref2)

    # 3) Forced 2-shard path: odd tile count triggers the even-tile rebalance
    #    (block_rows=80 -> 3 tiles -> rebalanced to tb=64 / 4 tiles, 2 per shard).
    loss3 = jax.block_until_ready(
        infonce_loss(a2, p2, n2, block_rows=80, num_shards=2))
    assert jnp.allclose(loss3, ref2, rtol=1e-5, atol=1e-5), (loss3, ref2)

    # 4) Forced 2-shard path with an unavoidable padded (clamped) slot:
    #    B=24, tb=8 -> 3 tiles, tiles_per_shard=2 -> last slot fully masked.
    B4, D4 = 24, 128
    a4 = jax.random.normal(k1, (B4, D4), dtype=jnp.float32)
    p4 = jax.random.normal(k2, (B4, D4), dtype=jnp.float32)
    n4 = jax.random.normal(k3, (B4, D4), dtype=jnp.float32)
    loss4 = jax.block_until_ready(
        infonce_loss(a4, p4, n4, block_rows=8, num_shards=2))
    ref4 = jax.block_until_ready(_infonce_ref(a4, p4, n4))
    assert jnp.allclose(loss4, ref4, rtol=1e-5, atol=1e-5), (loss4, ref4)

    # 5) bf16 inputs streamed as bf16 (halves HBM traffic); math is f32 inside.
    B5, D5 = 64, 256
    a5 = jax.random.normal(k1, (B5, D5), dtype=jnp.float32).astype(jnp.bfloat16)
    p5 = jax.random.normal(k2, (B5, D5), dtype=jnp.float32).astype(jnp.bfloat16)
    n5 = jax.random.normal(k3, (B5, D5), dtype=jnp.float32).astype(jnp.bfloat16)
    loss5 = jax.block_until_ready(infonce_loss(a5, p5, n5))
    ref5 = jax.block_until_ready(_infonce_ref(a5.astype(jnp.float32),
                                              p5.astype(jnp.float32),
                                              n5.astype(jnp.float32)))
    assert jnp.allclose(loss5, ref5, rtol=1e-4, atol=1e-4), (loss5, ref5)

    print("KERNEL_OK")
</pallas_src>

<mosaic_0001>
module attributes {stable_mosaic.version = 11 : i64} {
  func.func @_infonce_kernel(%arg0: i32, %arg1: i32, %arg2: memref<8x32xf32, #tpu.memory_space<vmem>>, %arg3: memref<8x32xf32, #tpu.memory_space<vmem>>, %arg4: memref<8x32xf32, #tpu.memory_space<vmem>>, %arg5: memref<1x1x1xf32, #tpu.memory_space<vmem>>, %arg6: memref<1x1x1xf32, #tpu.memory_space<vmem>>) attributes {dimension_semantics = [#tpu.dimension_semantics<parallel>, #tpu.dimension_semantics<arbitrary>], iteration_bounds = array<i64: 1, 1>, scalar_prefetch = 0 : i64, scratch_operands = 0 : i64, tpu.core_type = #tpu.core_type<tc>, window_params = [{transform_indices = @transform_0, window_bounds = array<i64: 8, 32>}, {transform_indices = @transform_1, window_bounds = array<i64: 8, 32>}, {transform_indices = @transform_2, window_bounds = array<i64: 8, 32>}, {transform_indices = @transform_3, window_bounds = array<i64: 1, 1, 1>}, {transform_indices = @transform_4, window_bounds = array<i64: 1, 1, 1>}]} {
    %c0_i32 = arith.constant 0 : i32
    %0 = arith.cmpi eq, %arg1, %c0_i32 : i32
    %1 = arith.extui %0 : i1 to i32
    %c0_i32_0 = arith.constant 0 : i32
    %2 = arith.cmpi ne, %1, %c0_i32_0 : i32
    scf.if %2 {
      %cst_18 = arith.constant 0.000000e+00 : f32
      %48 = vector.broadcast %cst_18 : f32 to vector<1x1x1xf32>
      %c0_19 = arith.constant 0 : index
      %c0_20 = arith.constant 0 : index
      %c0_21 = arith.constant 0 : index
      %49 = vector.load %arg5[%c0_19, %c0_20, %c0_21] : memref<1x1x1xf32, #tpu.memory_space<vmem>>, vector<1x1x1xf32>
      tpu.vector_store %arg5[%c0_19, %c0_20, %c0_21], %48 {strides = array<i32>} : memref<1x1x1xf32, #tpu.memory_space<vmem>>, vector<1x1x1xf32>,
      %cst_22 = arith.constant 0.000000e+00 : f32
      %50 = vector.broadcast %cst_22 : f32 to vector<1x1x1xf32>
      %c0_23 = arith.constant 0 : index
      %c0_24 = arith.constant 0 : index
      %c0_25 = arith.constant 0 : index
      %51 = vector.load %arg6[%c0_23, %c0_24, %c0_25] : memref<1x1x1xf32, #tpu.memory_space<vmem>>, vector<1x1x1xf32>
      tpu.vector_store %arg6[%c0_23, %c0_24, %c0_25], %50 {strides = array<i32>} : memref<1x1x1xf32, #tpu.memory_space<vmem>>, vector<1x1x1xf32>,
    } else {
    }
    %c0 = arith.constant 0 : index
    %c0_1 = arith.constant 0 : index
    %3 = vector.load %arg2[%c0, %c0_1] : memref<8x32xf32, #tpu.memory_space<vmem>>, vector<8x32xf32>
    %c0_2 = arith.constant 0 : index
    %c0_3 = arith.constant 0 : index
    %4 = vector.load %arg3[%c0_2, %c0_3] : memref<8x32xf32, #tpu.memory_space<vmem>>, vector<8x32xf32>
    %c0_4 = arith.constant 0 : index
    %c0_5 = arith.constant 0 : index
    %5 = vector.load %arg4[%c0_4, %c0_5] : memref<8x32xf32, #tpu.memory_space<vmem>>, vector<8x32xf32>
    %6 = arith.mulf %3, %3 : vector<8x32xf32>
    %cst = arith.constant dense<0.000000e+00> : vector<8xf32>
    %7 = vector.multi_reduction <add>, %6, %cst [1] : vector<8x32xf32> to vector<8xf32>
    %8 = vector.shape_cast %7 : vector<8xf32> to vector<8x1xf32>
    %9 = arith.mulf %4, %4 : vector<8x32xf32>
    %cst_6 = arith.constant dense<0.000000e+00> : vector<8xf32>
    %10 = vector.multi_reduction <add>, %9, %cst_6 [1] : vector<8x32xf32> to vector<8xf32>
    %11 = vector.shape_cast %10 : vector<8xf32> to vector<8x1xf32>
    %12 = arith.mulf %5, %5 : vector<8x32xf32>
    %cst_7 = arith.constant dense<0.000000e+00> : vector<8xf32>
    %13 = vector.multi_reduction <add>, %12, %cst_7 [1] : vector<8x32xf32> to vector<8xf32>
    %14 = vector.shape_cast %13 : vector<8xf32> to vector<8x1xf32>
    %15 = arith.mulf %3, %4 : vector<8x32xf32>
    %cst_8 = arith.constant dense<0.000000e+00> : vector<8xf32>
    %16 = vector.multi_reduction <add>, %15, %cst_8 [1] : vector<8x32xf32> to vector<8xf32>
    %17 = vector.shape_cast %16 : vector<8xf32> to vector<8x1xf32>
    %18 = arith.mulf %3, %5 : vector<8x32xf32>
    %cst_9 = arith.constant dense<0.000000e+00> : vector<8xf32>
    %19 = vector.multi_reduction <add>, %18, %cst_9 [1] : vector<8x32xf32> to vector<8xf32>
    %20 = vector.shape_cast %19 : vector<8xf32> to vector<8x1xf32>
    %21 = arith.mulf %8, %11 : vector<8x1xf32>
    %cst_10 = arith.constant 1.000000e-16 : f32
    %22 = vector.broadcast %cst_10 : f32 to vector<8x1xf32>
    %23 = arith.maximumf %21, %22 : vector<8x1xf32>
    %24 = math.rsqrt %23 : vector<8x1xf32>
    %25 = arith.mulf %17, %24 : vector<8x1xf32>
    %26 = arith.mulf %8, %14 : vector<8x1xf32>
    %cst_11 = arith.constant 1.000000e-16 : f32
    %27 = vector.broadcast %cst_11 : f32 to vector<8x1xf32>
    %28 = arith.maximumf %26, %27 : vector<8x1xf32>
    %29 = math.rsqrt %28 : vector<8x1xf32>
    %30 = arith.mulf %20, %29 : vector<8x1xf32>
    %cst_12 = arith.constant 1.000000e+00 : f32
    %31 = vector.broadcast %cst_12 : f32 to vector<8x1xf32>
    %32 = arith.subf %25, %31 : vector<8x1xf32>
    %33 = math.exp %32 : vector<8x1xf32>
    %cst_13 = arith.constant 1.000000e+00 : f32
    %34 = vector.broadcast %cst_13 : f32 to vector<8x1xf32>
    %35 = arith.subf %30, %34 : vector<8x1xf32>
    %36 = math.exp %35 : vector<8x1xf32>
    %37 = arith.addf %33, %36 : vector<8x1xf32>
    %c1_i32 = arith.constant 1 : i32
    %38 = arith.muli %arg0, %c1_i32 : i32
    %39 = arith.addi %38, %arg1 : i32
    %c8_i32 = arith.constant 8 : i32
    %40 = arith.muli %39, %c8_i32 : i32
    %c8_i32_14 = arith.constant 8 : i32
    %41 = arith.addi %40, %c8_i32_14 : i32
    %c8_i32_15 = arith.constant 8 : i32
    %42 = arith.cmpi sgt, %41, %c8_i32_15 : i32
    %true = arith.constant true
    %43 = arith.xori %42, %true : i1
    %44 = arith.extui %43 : i1 to i32
    %c0_i32_16 = arith.constant 0 : i32
    %45 = arith.cmpi ne, %44, %c0_i32_16 : i32
    scf.if %45 {
      %c0_18 = arith.constant 0 : index
      %c0_19 = arith.constant 0 : index
      %c0_20 = arith.constant 0 : index
      %48 = vector.load %arg5[%c0_18, %c0_19, %c0_20] : memref<1x1x1xf32, #tpu.memory_space<vmem>>, vector<1x1x1xf32>
      %cst_21 = arith.constant dense<0.000000e+00> : vector<1xf32>
      %49 = vector.multi_reduction <add>, %25, %cst_21 [0] : vector<8x1xf32> to vector<1xf32>
      %50 = vector.shape_cast %49 : vector<1xf32> to vector<1x1xf32>
      %51 = vector.shape_cast %50 : vector<1x1xf32> to vector<1x1x1xf32>
      %52 = arith.addf %48, %51 : vector<1x1x1xf32>
      %c0_22 = arith.constant 0 : index
      %c0_23 = arith.constant 0 : index
      %c0_24 = arith.constant 0 : index
      %53 = vector.load %arg5[%c0_22, %c0_23, %c0_24] : memref<1x1x1xf32, #tpu.memory_space<vmem>>, vector<1x1x1xf32>
      tpu.vector_store %arg5[%c0_22, %c0_23, %c0_24], %52 {strides = array<i32>} : memref<1x1x1xf32, #tpu.memory_space<vmem>>, vector<1x1x1xf32>,
      %c0_25 = arith.constant 0 : index
      %c0_26 = arith.constant 0 : index
      %c0_27 = arith.constant 0 : index
      %54 = vector.load %arg6[%c0_25, %c0_26, %c0_27] : memref<1x1x1xf32, #tpu.memory_space<vmem>>, vector<1x1x1xf32>
      %cst_28 = arith.constant dense<0.000000e+00> : vector<1xf32>
      %55 = vector.multi_reduction <add>, %37, %cst_28 [0] : vector<8x1xf32> to vector<1xf32>
      %56 = vector.shape_cast %55 : vector<1xf32> to vector<1x1xf32>
      %57 = vector.shape_cast %56 : vector<1x1xf32> to vector<1x1x1xf32>
      %58 = arith.addf %54, %57 : vector<1x1x1xf32>
      %c0_29 = arith.constant 0 : index
      %c0_30 = arith.constant 0 : index
      %c0_31 = arith.constant 0 : index
      %59 = vector.load %arg6[%c0_29, %c0_30, %c0_31] : memref<1x1x1xf32, #tpu.memory_space<vmem>>, vector<1x1x1xf32>
      tpu.vector_store %arg6[%c0_29, %c0_30, %c0_31], %58 {strides = array<i32>} : memref<1x1x1xf32, #tpu.memory_space<vmem>>, vector<1x1x1xf32>,
    } else {
    }
    %46 = arith.extui %42 : i1 to i32
    %c0_i32_17 = arith.constant 0 : i32
    %47 = arith.cmpi ne, %46, %c0_i32_17 : i32
    scf.if %47 {
      %48 = tpu.iota {dimensions = array<i32: 0>} : vector<8x1xi32>
      %49 = vector.broadcast %40 : i32 to vector<8x1xi32>
      %50 = arith.addi %49, %48 : vector<8x1xi32>
      %c8_i32_18 = arith.constant 8 : i32
      %51 = vector.broadcast %c8_i32_18 : i32 to vector<8x1xi32>
      %52 = arith.cmpi slt, %50, %51 : vector<8x1xi32>
      %c0_19 = arith.constant 0 : index
      %c0_20 = arith.constant 0 : index
      %c0_21 = arith.constant 0 : index
      %53 = vector.load %arg5[%c0_19, %c0_20, %c0_21] : memref<1x1x1xf32, #tpu.memory_space<vmem>>, vector<1x1x1xf32>
      %cst_22 = arith.constant 0.000000e+00 : f32
      %54 = vector.broadcast %cst_22 : f32 to vector<8x1xf32>
      %55 = arith.select %52, %25, %54 : vector<8x1xi1>, vector<8x1xf32>
      %cst_23 = arith.constant dense<0.000000e+00> : vector<1xf32>
      %56 = vector.multi_reduction <add>, %55, %cst_23 [0] : vector<8x1xf32> to vector<1xf32>
      %57 = vector.shape_cast %56 : vector<1xf32> to vector<1x1xf32>
      %58 = vector.shape_cast %57 : vector<1x1xf32> to vector<1x1x1xf32>
      %59 = arith.addf %53, %58 : vector<1x1x1xf32>
      %c0_24 = arith.constant 0 : index
      %c0_25 = arith.constant 0 : index
      %c0_26 = arith.constant 0 : index
      %60 = vector.load %arg5[%c0_24, %c0_25, %c0_26] : memref<1x1x1xf32, #tpu.memory_space<vmem>>, vector<1x1x1xf32>
      tpu.vector_store %arg5[%c0_24, %c0_25, %c0_26], %59 {strides = array<i32>} : memref<1x1x1xf32, #tpu.memory_space<vmem>>, vector<1x1x1xf32>,
      %c0_27 = arith.constant 0 : index
      %c0_28 = arith.constant 0 : index
      %c0_29 = arith.constant 0 : index
      %61 = vector.load %arg6[%c0_27, %c0_28, %c0_29] : memref<1x1x1xf32, #tpu.memory_space<vmem>>, vector<1x1x1xf32>
      %cst_30 = arith.constant 0.000000e+00 : f32
      %62 = vector.broadcast %cst_30 : f32 to vector<8x1xf32>
      %63 = arith.select %52, %37, %62 : vector<8x1xi1>, vector<8x1xf32>
      %cst_31 = arith.constant dense<0.000000e+00> : vector<1xf32>
      %64 = vector.multi_reduction <add>, %63, %cst_31 [0] : vector<8x1xf32> to vector<1xf32>
      %65 = vector.shape_cast %64 : vector<1xf32> to vector<1x1xf32>
      %66 = vector.shape_cast %65 : vector<1x1xf32> to vector<1x1x1xf32>
      %67 = arith.addf %61, %66 : vector<1x1x1xf32>
      %c0_32 = arith.constant 0 : index
      %c0_33 = arith.constant 0 : index
      %c0_34 = arith.constant 0 : index
      %68 = vector.load %arg6[%c0_32, %c0_33, %c0_34] : memref<1x1x1xf32, #tpu.memory_space<vmem>>, vector<1x1x1xf32>
      tpu.vector_store %arg6[%c0_32, %c0_33, %c0_34], %67 {strides = array<i32>} : memref<1x1x1xf32, #tpu.memory_space<vmem>>, vector<1x1x1xf32>,
    } else {
    }
    return
  }
  func.func @transform_0(%arg0: i32, %arg1: i32) -> (i32, i32) {
    %c1_i32 = arith.constant 1 : i32
    %0 = arith.muli %arg0, %c1_i32 : i32
    %1 = arith.addi %0, %arg1 : i32
    %c0_i32 = arith.constant 0 : i32
    %2 = arith.minsi %1, %c0_i32 : i32
    %c0_i32_0 = arith.constant 0 : i32
    %c0_i32_1 = arith.constant 0 : i32
    return %2, %c0_i32_0 : i32, i32
  }
  func.func @transform_1(%arg0: i32, %arg1: i32) -> (i32, i32) {
    %c1_i32 = arith.constant 1 : i32
    %0 = arith.muli %arg0, %c1_i32 : i32
    %1 = arith.addi %0, %arg1 : i32
    %c0_i32 = arith.constant 0 : i32
    %2 = arith.minsi %1, %c0_i32 : i32
    %c0_i32_0 = arith.constant 0 : i32
    %c0_i32_1 = arith.constant 0 : i32
    return %2, %c0_i32_0 : i32, i32
  }
  func.func @transform_2(%arg0: i32, %arg1: i32) -> (i32, i32) {
    %c1_i32 = arith.constant 1 : i32
    %0 = arith.muli %arg0, %c1_i32 : i32
    %1 = arith.addi %0, %arg1 : i32
    %c0_i32 = arith.constant 0 : i32
    %2 = arith.minsi %1, %c0_i32 : i32
    %c0_i32_0 = arith.constant 0 : i32
    %c0_i32_1 = arith.constant 0 : i32
    return %2, %c0_i32_0 : i32, i32
  }
  func.func @transform_3(%arg0: i32, %arg1: i32) -> (i32, i32, i32) {
    %c0_i32 = arith.constant 0 : i32
    %c0_i32_0 = arith.constant 0 : i32
    %c0_i32_1 = arith.constant 0 : i32
    return %arg0, %c0_i32, %c0_i32_0 : i32, i32, i32
  }
  func.func @transform_4(%arg0: i32, %arg1: i32) -> (i32, i32, i32) {
    %c0_i32 = arith.constant 0 : i32
    %c0_i32_0 = arith.constant 0 : i32
    %c0_i32_1 = arith.constant 0 : i32
    return %arg0, %c0_i32, %c0_i32_0 : i32, i32, i32
  }
}

</mosaic_0001>

<llo_original>
// kernel: tpu_custom_call.1
$region0: #{tpu_custom_call.1}
  #allocation0 [shape = 'u32[]', space=smem, size = 0x4, offset = 0x4, fixed_abs, tag = 'smem constant byte address 0x4 - core index']
  #allocation1 [shape = 'u32[144,128]{1,0:T(1,128)}', space=vmem, size = 0x12000, scoped, tag = 'internal scratch']
  %s0 = inlined_call_operand.hbm [shape: f32[8,32], index: 0, kind: input, shape index: {}]
  %s1 = inlined_call_operand.hbm [shape: f32[8,32], index: 1, kind: input, shape index: {}]
  %s2 = inlined_call_operand.hbm [shape: f32[8,32], index: 2, kind: input, shape index: {}]
  %s3 = inlined_call_operand.hbm [shape: f32[1,1,1], index: 3, kind: output, shape index: {0}]
  %s4 = inlined_call_operand.hbm [shape: f32[1,1,1], index: 4, kind: output, shape index: {1}]
  %5 = xla_tuple %s3, %s4
  %s6 = sld [smem:[#allocation0]]
  $region54: #{tpu_custom_call.1} parent=0
    _
  %s8 = ssub.s32 1, %s6
  %s9 = scalar_select 0, %s8, %s6
  $region1: #{tpu_custom_call.1} parent=0
    #allocation2 [shape = 'u8[4096]{0}', space=vmem, size = 0x1000, scoped, tag = 'input window, operand 0, single buffered']
    #allocation3 [shape = 's32[1]{0}', space=sflag, size = 0x4, scoped, tag = 'scoped memory for tpu_custom_call.1']
    #allocation4 [shape = 's32[1]{0}', space=sflag, size = 0x4, scoped, tag = 'scoped memory for tpu_custom_call.1']
    #allocation5 [shape = 'u8[4096]{0}', space=vmem, size = 0x1000, scoped, tag = 'input window, operand 1, single buffered']
    #allocation6 [shape = 's32[1]{0}', space=sflag, size = 0x4, scoped, tag = 'scoped memory for tpu_custom_call.1']
    #allocation7 [shape = 'u8[4096]{0}', space=vmem, size = 0x1000, scoped, tag = 'input window, operand 2, single buffered']
    #allocation8 [shape = 'u8[512]{0}', space=vmem, size = 0x400, scoped, tag = 'output window, operand 0, single buffered']
    #allocation9 [shape = 'u8[512]{0}', space=vmem, size = 0x400, scoped, tag = 'output window, operand 1, single buffered']
    #allocation10 [shape = 's32[1]{0}', space=sflag, size = 0x4, scoped, tag = 'scoped memory for tpu_custom_call.1']
    %10 = vsyncpa [#allocation3], 0
    %11 = vsyncpa [#allocation6], 0
    %12 = vsyncpa [#allocation4], 0
    %13 = vsyncpa [#allocation10], 0
    // Predicated region
    $region2: #{tpu_custom_call.1} parent=1 // pred_check
      _
    $region3: #{tpu_custom_call.1} parent=1 // pred_check_branch
      %15 = sbr.rel (0) target = $region5
    $region4: #{tpu_custom_call.1} parent=1 // pred_region
      %s16 = sadd.s32 0, 0
      %p17 = scmp.lt.s32.totalorder %s16, 0
      %s18 = scalar_select %p17, %s16, 0
      %s20 = ssub.s32 128, 128
      %21 = vsyncadd [#allocation3], %s20
      %s22 = smul.addr %s18, 128
      %s23 = scalar_lea.hbm %s0, %s22
      %s25 = sshll.u32 [#allocation2], 4
      %s26 = int_to_ptr.vmem [resolvable:$true] %s25
      %28 = dma.hbm_to_vmem [thread:$0]  %s23, 128, %s26, [#allocation3]
    $region5: #{tpu_custom_call.1} parent=1 // pred_fallthru
      _
    // Predicated region
    $region6: #{tpu_custom_call.1} parent=1 // pred_check
      _
    $region7: #{tpu_custom_call.1} parent=1 // pred_check_branch
      %30 = sbr.rel (0) target = $region9
    $region8: #{tpu_custom_call.1} parent=1 // pred_region
      %s31 = sadd.s32 0, 0
      %p32 = scmp.lt.s32.totalorder %s31, 0
      %s33 = scalar_select %p32, %s31, 0
      %s35 = ssub.s32 128, 128
      %36 = vsyncadd [#allocation6], %s35
      %s37 = smul.addr %s33, 128
      %s38 = scalar_lea.hbm %s1, %s37
      %s40 = sshll.u32 [#allocation5], 4
      %s41 = int_to_ptr.vmem [resolvable:$true] %s40
      %43 = dma.hbm_to_vmem [thread:$0]  %s38, 128, %s41, [#allocation6]
    $region9: #{tpu_custom_call.1} parent=1 // pred_fallthru
      _
    // Predicated region
    $region10: #{tpu_custom_call.1} parent=1 // pred_check
      _
    $region11: #{tpu_custom_call.1} parent=1 // pred_check_branch
      %45 = sbr.rel (0) target = $region13
    $region12: #{tpu_custom_call.1} parent=1 // pred_region
      %s46 = sadd.s32 0, 0
      %p47 = scmp.lt.s32.totalorder %s46, 0
      %s48 = scalar_select %p47, %s46, 0
      %s50 = ssub.s32 128, 128
      %51 = vsyncadd [#allocation6], %s50
      %s52 = smul.addr %s48, 128
      %s53 = scalar_lea.hbm %s2, %s52
      %s55 = sshll.u32 [#allocation7], 4
      %s56 = int_to_ptr.vmem [resolvable:$true] %s55
      %58 = dma.hbm_to_vmem [thread:$0]  %s53, 128, %s56, [#allocation6]
    $region13: #{tpu_custom_call.1} parent=1 // pred_fallthru
      _
    // Predicated region
    $region14: #{tpu_custom_call.1} parent=1 // pred_check
      _
    $region15: #{tpu_custom_call.1} parent=1 // pred_check_branch
      %60 = sbr.rel (0) target = $region17
    $region16: #{tpu_custom_call.1} parent=1 // pred_region
      %61 = dma.done [#allocation3], 128
    $region17: #{tpu_custom_call.1} parent=1 // pred_fallthru
      _
    // Predicated region
    $region18: #{tpu_custom_call.1} parent=1 // pred_check
      _
    $region19: #{tpu_custom_call.1} parent=1 // pred_check_branch
      %63 = sbr.rel (0) target = $region21
    $region20: #{tpu_custom_call.1} parent=1 // pred_region
      %64 = dma.done [#allocation6], 128
    $region21: #{tpu_custom_call.1} parent=1 // pred_fallthru
      _
    // Predicated region
    $region22: #{tpu_custom_call.1} parent=1 // pred_check
      _
    $region23: #{tpu_custom_call.1} parent=1 // pred_check_branch
      %66 = sbr.rel (0) target = $region25
    $region24: #{tpu_custom_call.1} parent=1 // pred_region
      %67 = dma.done [#allocation6], 128
    $region25: #{tpu_custom_call.1} parent=1 // pred_fallthru
      _
    %s68 = sadd.s32 0, 0
    %p69 = scmp.lt.s32.totalorder %s68, 0
    %s70 = scalar_select %p69, %s68, 0
    %s71 = sadd.s32 0, 0
    %p72 = scmp.lt.s32.totalorder %s71, 0
    %s73 = scalar_select %p72, %s71, 0
    %s74 = sadd.s32 0, 0
    %p75 = scmp.lt.s32.totalorder %s74, 0
    %s76 = scalar_select %p75, %s74, 0
    %p77 = scmp.eq.s32.totalorder 0, 0
    // Predicated region
    $region26: #{tpu_custom_call.1} parent=1 // pred_check
      %p78 = pneg %p77
    $region27: #{tpu_custom_call.1} parent=1 // pred_check_branch
      %80 = sbr.rel (%p78) target = $region29
    $region28: #{tpu_custom_call.1} parent=1 // pred_region
      %vm81 = vcmask 0
      %82 = vst.msk [vmem:[#allocation8] sm:$0x1] %vm81, 0.0
      %83 = vst.msk [vmem:[#allocation9] sm:$0x1] %vm81, 0.0
    $region29: #{tpu_custom_call.1} parent=1 // pred_fallthru
      _
    %v84 = vld [vmem:[#allocation2] sm:$0xff]
    %v85 = vld [vmem:[#allocation5] sm:$0xff]
    %v86 = vld [vmem:[#allocation7] sm:$0xff]
    %v87 = vmul.f32 %v84, %v84
    %vm88 = vcmask 261120
    %v89 = vsel %vm88, %v87, 0.0
    %90 = vadd.xlane.f32.xlu0 %v89
    %v91 = vpop.xlane.xlu0 %90
    %v92 = vmul.f32 %v85, %v85
    %v93 = vsel %vm88, %v92, 0.0
    %94 = vadd.xlane.f32.xlu0 %v93
    %v95 = vpop.xlane.xlu0 %94
    %v96 = vmul.f32 %v86, %v86
    %v97 = vsel %vm88, %v96, 0.0
    %98 = vadd.xlane.f32.xlu0 %v97
    %v99 = vpop.xlane.xlu0 %98
    %v100 = vmul.f32 %v84, %v85
    %v101 = vsel %vm88, %v100, 0.0
    %102 = vadd.xlane.f32.xlu0 %v101
    %v103 = vpop.xlane.xlu0 %102
    %v104 = vmul.f32 %v84, %v86
    %v105 = vsel %vm88, %v104, 0.0
    %106 = vadd.xlane.f32.xlu0 %v105
    %v107 = vpop.xlane.xlu0 %106
    %v108 = vmul.f32 %v91, %v95
    %v109 = vmax.f32 %v108, 1e-16
    %v110 = vrsqrt.pop %v109
    %v111 = vmul.f32 %v103, %v110
    %v112 = vmul.f32 %v91, %v99
    %v113 = vmax.f32 %v112, 1e-16
    %v114 = vrsqrt.pop %v113
    %v115 = vmul.f32 %v107, %v114
    %v116 = vsub.f32 %v111, 1.0
    %v117 = vmul.f32 %v116, 1.442695
    %v118 = vpow.pop %v117
    %v119 = vsub.f32 %v115, 1.0
    %v120 = vmul.f32 %v119, 1.442695
    %v121 = vpow.pop %v120
    %v122 = vadd.f32 %v118, %v121
    %s123 = sadd.s32 0, 0
    %s124 = smul.u32 %s123, 8
    %s125 = sadd.s32 %s124, 8
    %p126 = scmp.gt.s32.totalorder %s125, 8
    %p127 = scmp.le.s32.totalorder %s125, 8
    // Predicated region
    $region30: #{tpu_custom_call.1} parent=1 // pred_check
      %p128 = pneg %p127
    $region31: #{tpu_custom_call.1} parent=1 // pred_check_branch
      %130 = sbr.rel (%p128) target = $region33
    $region32: #{tpu_custom_call.1} parent=1 // pred_region
      %v131 = vld [vmem:[#allocation8] sm:$0x1]
      %v132 = vrot.slane %v111, 4
      %v133 = vadd.f32 %v111, %v132
      %v134 = vrot.slane %v133, 2
      %v135 = vadd.f32 %v133, %v134
      %v136 = vrot.slane %v135, 1
      %v137 = vadd.f32 %v135, %v136
      %v138 = vadd.f32 %v131, %v137
      %vm139 = vcmask 0
      %140 = vst.msk [vmem:[#allocation8] sm:$0x1] %vm139, %v138
      %v141 = vld [vmem:[#allocation9] sm:$0x1]
      %v142 = vrot.slane %v122, 4
      %v143 = vadd.f32 %v122, %v142
      %v144 = vrot.slane %v143, 2
      %v145 = vadd.f32 %v143, %v144
      %v146 = vrot.slane %v145, 1
      %v147 = vadd.f32 %v145, %v146
      %v148 = vadd.f32 %v141, %v147
      %149 = vst.msk [vmem:[#allocation9] sm:$0x1] %vm139, %v148
    $region33: #{tpu_custom_call.1} parent=1 // pred_fallthru
      _
    // Predicated region
    $region34: #{tpu_custom_call.1} parent=1 // pred_check
      %p150 = pneg %p126
    $region35: #{tpu_custom_call.1} parent=1 // pred_check_branch
      %152 = sbr.rel (%p150) target = $region37
    $region36: #{tpu_custom_call.1} parent=1 // pred_region
      %v153 = vlaneseq
      %v154 = vshrl.u32 %v153, 7
      %v155 = vstv %s124
      %v156 = vadd.s32 %v155, %v154
      %vm157 = vcmp.lt.s32.totalorder %v156, 8
      %v158 = vld [vmem:[#allocation8] sm:$0x1]
      %v159 = vsel %vm157, %v111, 0.0
      %v160 = vrot.slane %v159, 4
      %v161 = vadd.f32 %v159, %v160
      %v162 = vrot.slane %v161, 2
      %v163 = vadd.f32 %v161, %v162
      %v164 = vrot.slane %v163, 1
      %v165 = vadd.f32 %v163, %v164
      %v166 = vadd.f32 %v158, %v165
      %vm167 = vcmask 0
      %168 = vst.msk [vmem:[#allocation8] sm:$0x1] %vm167, %v166
      %v169 = vld [vmem:[#allocation9] sm:$0x1]
      %v170 = vsel %vm157, %v122, 0.0
      %v171 = vrot.slane %v170, 4
      %v172 = vadd.f32 %v170, %v171
      %v173 = vrot.slane %v172, 2
      %v174 = vadd.f32 %v172, %v173
      %v175 = vrot.slane %v174, 1
      %v176 = vadd.f32 %v174, %v175
      %v177 = vadd.f32 %v169, %v176
      %178 = vst.msk [vmem:[#allocation9] sm:$0x1] %vm167, %v177
    $region37: #{tpu_custom_call.1} parent=1 // pred_fallthru
      _
    // Predicated region
    $region38: #{tpu_custom_call.1} parent=1 // pred_check
      _
    $region39: #{tpu_custom_call.1} parent=1 // pred_check_branch
      %180 = sbr.rel (0) target = $region41
    $region40: #{tpu_custom_call.1} parent=1 // pred_region
      %s182 = ssub.s32 16, 16
      %183 = vsyncadd [#allocation4], %s182
      %s185 = sshll.u32 [#allocation8], 4
      %s186 = int_to_ptr.vmem [resolvable:$true] %s185
      %188 = dma.vmem_to_hbm [thread:$0]  %s186, 16, %s3, [#allocation4]
    $region41: #{tpu_custom_call.1} parent=1 // pred_fallthru
      _
    // Predicated region
    $region42: #{tpu_custom_call.1} parent=1 // pred_check
      _
    $region43: #{tpu_custom_call.1} parent=1 // pred_check_branch
      %190 = sbr.rel (0) target = $region45
    $region44: #{tpu_custom_call.1} parent=1 // pred_region
      %s192 = ssub.s32 16, 16
      %193 = vsyncadd [#allocation10], %s192
      %s195 = sshll.u32 [#allocation9], 4
      %s196 = int_to_ptr.vmem [resolvable:$true] %s195
      %198 = dma.vmem_to_hbm [thread:$0]  %s196, 16, %s4, [#allocation10]
    $region45: #{tpu_custom_call.1} parent=1 // pred_fallthru
      _
    // Predicated region
    $region46: #{tpu_custom_call.1} parent=1 // pred_check
      _
    $region47: #{tpu_custom_call.1} parent=1 // pred_check_branch
      %200 = sbr.rel (0) target = $region49
    $region48: #{tpu_custom_call.1} parent=1 // pred_region
      %201 = dma.done [#allocation4], 16
    $region49: #{tpu_custom_call.1} parent=1 // pred_fallthru
      _
    // Predicated region
    $region50: #{tpu_custom_call.1} parent=1 // pred_check
      _
    $region51: #{tpu_custom_call.1} parent=1 // pred_check_branch
      %203 = sbr.rel (0) target = $region53
    $region52: #{tpu_custom_call.1} parent=1 // pred_region
      %204 = dma.done [#allocation10], 16
    $region53: #{tpu_custom_call.1} parent=1 // pred_fallthru
      _
    %205 = vsyncpa [#allocation3], 1
    %206 = vsyncpa [#allocation6], 1
    %207 = vsyncpa [#allocation4], 1
    %208 = vsyncpa [#allocation10], 1

</llo_original>
